<compile_context>
chip_gen: v6e
topology: v6e:2x2x1
jax: 0.10.0
libtpu: 0.0.40
codegen_flags: <defaults>
</compile_context>

<pallas_src>
import jax
import jax.numpy as jnp
from jax.experimental import pallas as pl
from jax.experimental.pallas import tpu as pltpu

LANE = 128     # vreg lane width (last dim)
SUBLANE = 8    # vreg sublane width (second-to-last dim)

_HAS_BUFFERED = hasattr(pl, "Buffered")


def _round_up(n, m):
    return ((n + m - 1) // m) * m


def _const_spec(shape, single_buffer):
    """BlockSpec for a block that never changes across the grid (weights/biases).

    With single_buffer=True we request 1-deep buffering (no pointless double
    buffer for a constant block); falls back to the default spec if the running
    JAX version does not support pipeline_mode / Buffered(1).
    """
    zeros = (0,) * len(shape)
    index_map = lambda i, _z=zeros: _z
    if single_buffer and _HAS_BUFFERED:
        try:
            return pl.BlockSpec(shape, index_map, pipeline_mode=pl.Buffered(1))
        except TypeError:
            pass
    return pl.BlockSpec(shape, index_map)


def _make_dqn_kernel(n_layers):
    """Fused MLP kernel. Ref order: (x, w0, b0, ..., w_{L-1}, b_{L-1}, out)."""
    def kernel(*refs):
        x_ref = refs[0]
        param_refs = refs[1:1 + 2 * n_layers]
        out_ref = refs[1 + 2 * n_layers]

        y = x_ref[...]                                           # (batch_tile, K0)
        for i in range(n_layers):
            w = param_refs[2 * i][...]                           # (Kin, Kout) f32/bf16
            b = param_refs[2 * i + 1][...].astype(jnp.float32)   # (1, Kout) f32
            y = jnp.dot(y.astype(w.dtype), w,
                        preferred_element_type=jnp.float32) + b
            if i < n_layers - 1:
                y = jnp.maximum(y, 0.0)                          # F.relu
        out_ref[...] = y.astype(out_ref.dtype)
    return kernel


def prepare_dqn_params(params, *, param_dtype=jnp.float32, pad_final_lanes=False,
                       lane_multiple=LANE):
    """Pad + cast the weights ONCE, outside the per-step forward.

    params: list of (W, b) with W: (in, out) == PyTorch weight.T, b: (out,) or (1, out).
    Padding is exact: padded x cols are 0, padded W rows/cols and b lanes are 0,
    so padded output lanes are exactly 0 and real lanes are unchanged.
    lane_multiple: 128 by default; use 256 for compute-bound widths on v6e/v7x MXUs.
    """
    param_dtype = jnp.dtype(param_dtype)
    n_layers = len(params)
    n_obs = params[0][0].shape[0]
    n_actions = params[-1][0].shape[1]

    # Input dim only rounded to the sublane granule (full-dim blocks < 128 lanes
    # are legal and cut streamed x traffic); hidden dims lane-padded; final dim
    # optionally lane-padded (A/B: unpadded masked store vs padded unmasked store).
    dims_p = [_round_up(n_obs, SUBLANE)]
    for li, (w, _) in enumerate(params):
        d = w.shape[1]
        if li == n_layers - 1 and not pad_final_lanes:
            dims_p.append(d)
        else:
            dims_p.append(_round_up(d, lane_multiple))

    flat = []
    for li, (w, b) in enumerate(params):
        kin, kout = dims_p[li], dims_p[li + 1]
        w = jnp.asarray(w, jnp.float32)
        b = jnp.reshape(jnp.asarray(b, jnp.float32), (1, -1))
        w_p = jnp.zeros((kin, kout), param_dtype)
        w_p = w_p.at[:w.shape[0], :w.shape[1]].set(w.astype(param_dtype))
        b_p = jnp.zeros((1, kout), jnp.float32).at[:, :b.shape[1]].set(b)
        flat.extend([w_p, b_p])

    return {
        "flat_params": flat,
        "dims_p": dims_p,
        "n_obs": n_obs,
        "n_actions": n_actions,
        "n_layers": n_layers,
        "param_dtype": param_dtype,
    }


def dqn_forward(x, prepared, *, batch_tile=None, single_buffer_weights=True,
                out_dtype=jnp.float32):
    """Fused DQN forward on pre-padded params; returns (B, n_actions) f32 by default."""
    n_layers = prepared["n_layers"]
    dims_p = prepared["dims_p"]
    n_obs = prepared["n_obs"]
    n_actions = prepared["n_actions"]
    flat_params = prepared["flat_params"]
    param_dtype = prepared["param_dtype"]

    B = x.shape[0]
    assert x.shape[1] == n_obs, "x feature dim mismatch"

    # bf16 weights -> also stream activations in bf16 (halves dominant HBM traffic);
    # accumulation stays f32 inside the kernel.  v5e note: bf16 only saves DMA there.
    compute_bf16 = param_dtype == jnp.dtype(jnp.bfloat16)
    x_dtype = jnp.dtype(jnp.bfloat16) if compute_bf16 else jnp.dtype(jnp.float32)
    out_dtype = jnp.dtype(out_dtype)

    # Batch tiling: 8-row granularity for tiny acting batches, up to 1024 rows for
    # replay batches, and >= 2 grid steps whenever B > 8 so v7x's two TensorCores
    # both get work via the "parallel" batch axis.
    if batch_tile is None:
        n_tiles = 1 if B <= SUBLANE else max(2, pl.cdiv(B, 1024))
        batch_tile = pl.cdiv(B, n_tiles)
    batch_tile = max(SUBLANE, _round_up(batch_tile, SUBLANE))
    B_pad = _round_up(B, batch_tile)
    grid = (B_pad // batch_tile,)

    K0 = dims_p[0]
    if B_pad == B and K0 == n_obs and x.dtype == x_dtype:
        x_p = x                                       # zero wrapper copies
    else:
        x_p = jnp.zeros((B_pad, K0), x_dtype).at[:B, :n_obs].set(x.astype(x_dtype))

    # Cost estimate so XLA schedules the surrounding graph around this small call.
    flops = 2 * B_pad * sum(dims_p[i] * dims_p[i + 1] for i in range(n_layers))
    param_bytes = sum(int(p.size) * p.dtype.itemsize for p in flat_params)
    bytes_accessed = int(B_pad * K0 * x_dtype.itemsize + param_bytes
                         + B_pad * dims_p[-1] * out_dtype.itemsize)

    # VMEM budget: double-buffered x/out tiles + (single- or double-buffered)
    # weights + slack; clamp into [32 MiB, 64 MiB] (v7x physical VMEM is 64 MiB).
    wb_bufs = 1 if (single_buffer_weights and _HAS_BUFFERED) else 2
    vmem_needed = (2 * batch_tile * (K0 * x_dtype.itemsize
                                     + dims_p[-1] * out_dtype.itemsize)
                   + wb_bufs * param_bytes + (4 << 20))
    vmem_limit = int(min(max(vmem_needed, 32 << 20), 64 << 20))
    # TODO(synk): for production hidden widths on v7x (64 MiB VMEM), K-tile the
    # weights with an "arbitrary" reduction axis + f32 accumulator instead of
    # keeping every full W resident.

    def _call(single_buffer):
        in_specs = [pl.BlockSpec((batch_tile, K0), lambda i: (i, 0))]
        for li in range(n_layers):
            in_specs.append(_const_spec(flat_params[2 * li].shape, single_buffer))
            in_specs.append(_const_spec(flat_params[2 * li + 1].shape, single_buffer))
        out_spec = pl.BlockSpec((batch_tile, dims_p[-1]), lambda i: (i, 0))
        return pl.pallas_call(
            _make_dqn_kernel(n_layers),
            out_shape=jax.ShapeDtypeStruct((B_pad, dims_p[-1]), out_dtype),
            grid=grid,
            in_specs=in_specs,
            out_specs=out_spec,
            compiler_params=pltpu.CompilerParams(
                dimension_semantics=("parallel",),   # batch axis shards across TCs
                vmem_limit_bytes=vmem_limit),
            cost_estimate=pl.CostEstimate(
                flops=int(flops), transcendentals=0, bytes_accessed=bytes_accessed),
        )(x_p, *flat_params)

    if single_buffer_weights:
        try:
            out_p = _call(True)
        except Exception:   # older JAX without Buffered(1) support on constant blocks
            out_p = _call(False)
    else:
        out_p = _call(False)

    if B_pad != B or dims_p[-1] != n_actions:
        return out_p[:B, :n_actions]
    return out_p


def init_dqn_params(key, n_observations, n_hiddens_per_layer, n_actions):
    """Deterministic init mirroring nn.Linear default (uniform +/- 1/sqrt(fan_in))."""
    dims = [n_observations] + list(n_hiddens_per_layer) + [n_actions]
    params = []
    for i in range(len(dims) - 1):
        fan_in, fan_out = dims[i], dims[i + 1]
        key, kw, kb = jax.random.split(key, 3)
        bound = 1.0 / jnp.sqrt(jnp.float32(fan_in))
        w = jax.random.uniform(kw, (fan_in, fan_out), jnp.float32, -bound, bound)
        b = jax.random.uniform(kb, (1, fan_out), jnp.float32, -bound, bound)
        params.append((w, b))
    return params


def dqn_reference(x, params):
    y = x
    for i, (w, b) in enumerate(params):
        y = y @ w + b
        if i < len(params) - 1:
            y = jnp.maximum(y, 0.0)
    return y


if __name__ == "__main__":
    # Small DQN: 32 observations -> hiddens [64, 128] -> 8 actions.
    n_observations = 32
    n_hiddens_per_layer = [64, 128]
    n_actions = 8

    key = jax.random.PRNGKey(0)
    key, kx_small, kx_big = jax.random.split(key, 3)
    params = init_dqn_params(key, n_observations, n_hiddens_per_layer, n_actions)

    # Pad/cast params ONCE; reuse across every forward call.
    prepared_f32 = prepare_dqn_params(params)
    prepared_f32_padout = prepare_dqn_params(params, pad_final_lanes=True)
    prepared_bf16 = prepare_dqn_params(params, param_dtype=jnp.bfloat16)

    # (1) tiny acting-style batch (B=8): grid=(1,), x passes through with no pad copy.
    x_small = jax.random.normal(kx_small, (8, n_observations), jnp.float32)
    out_small = jax.block_until_ready(dqn_forward(x_small, prepared_f32))
    ref_small = dqn_reference(x_small, params)
    assert out_small.shape == (8, n_actions)
    assert jnp.allclose(out_small, ref_small, atol=1e-4, rtol=1e-4), "small batch mismatch"

    # (1b) A/B path: lane-dense padded final output (unmasked vst), sliced in wrapper.
    out_small_pad = jax.block_until_ready(dqn_forward(x_small, prepared_f32_padout))
    assert jnp.allclose(out_small_pad, ref_small, atol=1e-4, rtol=1e-4), "padded-out mismatch"

    # (2) replay-buffer-style, non-divisible batch (B=200): auto tile -> grid=(2,)
    #     so both v7x TensorCores get a parallel step.
    x_big = jax.random.normal(kx_big, (200, n_observations), jnp.float32)
    out_big = jax.block_until_ready(dqn_forward(x_big, prepared_f32))
    ref_big = dqn_reference(x_big, params)
    assert out_big.shape == (200, n_actions)
    assert jnp.allclose(out_big, ref_big, atol=1e-4, rtol=1e-4), "big batch mismatch"

    # (3) bf16 weights + bf16-streamed activations (v6e/v7x MXU fast path),
    #     f32 accumulation, loose tolerance.
    out_bf16 = jax.block_until_ready(dqn_forward(x_big, prepared_bf16))
    assert jnp.allclose(out_bf16, ref_big, atol=1e-1, rtol=1e-1), "bf16 path mismatch"

    print("KERNEL_OK")
</pallas_src>

<mosaic_0001>
module attributes {stable_mosaic.version = 11 : i64} {
  func.func @kernel(%arg0: i32, %arg1: memref<8x32xf32, #tpu.memory_space<vmem>>, %arg2: memref<32x128xf32, #tpu.memory_space<vmem>>, %arg3: memref<1x128xf32, #tpu.memory_space<vmem>>, %arg4: memref<128x128xf32, #tpu.memory_space<vmem>>, %arg5: memref<1x128xf32, #tpu.memory_space<vmem>>, %arg6: memref<128x8xf32, #tpu.memory_space<vmem>>, %arg7: memref<1x8xf32, #tpu.memory_space<vmem>>, %arg8: memref<8x8xf32, #tpu.memory_space<vmem>>) attributes {dimension_semantics = [#tpu.dimension_semantics<parallel>], iteration_bounds = array<i64: 1>, scalar_prefetch = 0 : i64, scratch_operands = 0 : i64, tpu.core_type = #tpu.core_type<tc>, window_params = [{transform_indices = @transform_0, window_bounds = array<i64: 8, 32>}, {pipeline_mode = #tpu.pipeline_mode<synchronous>, transform_indices = @transform_1, window_bounds = array<i64: 32, 128>}, {pipeline_mode = #tpu.pipeline_mode<synchronous>, transform_indices = @transform_2, window_bounds = array<i64: 1, 128>}, {pipeline_mode = #tpu.pipeline_mode<synchronous>, transform_indices = @transform_3, window_bounds = array<i64: 128, 128>}, {pipeline_mode = #tpu.pipeline_mode<synchronous>, transform_indices = @transform_4, window_bounds = array<i64: 1, 128>}, {pipeline_mode = #tpu.pipeline_mode<synchronous>, transform_indices = @transform_5, window_bounds = array<i64: 128, 8>}, {pipeline_mode = #tpu.pipeline_mode<synchronous>, transform_indices = @transform_6, window_bounds = array<i64: 1, 8>}, {transform_indices = @transform_7, window_bounds = array<i64: 8, 8>}]} {
    %c0 = arith.constant 0 : index
    %c0_0 = arith.constant 0 : index
    %0 = vector.load %arg1[%c0, %c0_0] : memref<8x32xf32, #tpu.memory_space<vmem>>, vector<8x32xf32>
    %c0_1 = arith.constant 0 : index
    %c0_2 = arith.constant 0 : index
    %1 = vector.load %arg2[%c0_1, %c0_2] : memref<32x128xf32, #tpu.memory_space<vmem>>, vector<32x128xf32>
    %c0_3 = arith.constant 0 : index
    %c0_4 = arith.constant 0 : index
    %2 = vector.load %arg3[%c0_3, %c0_4] : memref<1x128xf32, #tpu.memory_space<vmem>>, vector<1x128xf32>
    %cst = arith.constant dense<0.000000e+00> : vector<8x128xf32>
    %3 = tpu.matmul %0, %1, %cst {dimension_numbers = #tpu.dot_dimension_numbers<[1], [0], [0], [1], [0, 0, 1, 1], [], []>} : vector<8x32xf32>, vector<32x128xf32>, vector<8x128xf32> -> vector<8x128xf32>
    %4 = vector.broadcast %2 : vector<1x128xf32> to vector<8x128xf32>
    %5 = arith.addf %3, %4 : vector<8x128xf32>
    %cst_5 = arith.constant 0.000000e+00 : f32
    %6 = vector.broadcast %cst_5 : f32 to vector<8x128xf32>
    %7 = arith.maximumf %5, %6 : vector<8x128xf32>
    %c0_6 = arith.constant 0 : index
    %c0_7 = arith.constant 0 : index
    %8 = vector.load %arg4[%c0_6, %c0_7] : memref<128x128xf32, #tpu.memory_space<vmem>>, vector<128x128xf32>
    %c0_8 = arith.constant 0 : index
    %c0_9 = arith.constant 0 : index
    %9 = vector.load %arg5[%c0_8, %c0_9] : memref<1x128xf32, #tpu.memory_space<vmem>>, vector<1x128xf32>
    %cst_10 = arith.constant dense<0.000000e+00> : vector<8x128xf32>
    %10 = tpu.matmul %7, %8, %cst_10 {dimension_numbers = #tpu.dot_dimension_numbers<[1], [0], [0], [1], [0, 0, 1, 1], [], []>} : vector<8x128xf32>, vector<128x128xf32>, vector<8x128xf32> -> vector<8x128xf32>
    %11 = vector.broadcast %9 : vector<1x128xf32> to vector<8x128xf32>
    %12 = arith.addf %10, %11 : vector<8x128xf32>
    %cst_11 = arith.constant 0.000000e+00 : f32
    %13 = vector.broadcast %cst_11 : f32 to vector<8x128xf32>
    %14 = arith.maximumf %12, %13 : vector<8x128xf32>
    %c0_12 = arith.constant 0 : index
    %c0_13 = arith.constant 0 : index
    %15 = vector.load %arg6[%c0_12, %c0_13] : memref<128x8xf32, #tpu.memory_space<vmem>>, vector<128x8xf32>
    %c0_14 = arith.constant 0 : index
    %c0_15 = arith.constant 0 : index
    %16 = vector.load %arg7[%c0_14, %c0_15] : memref<1x8xf32, #tpu.memory_space<vmem>>, vector<1x8xf32>
    %cst_16 = arith.constant dense<0.000000e+00> : vector<8x8xf32>
    %17 = tpu.matmul %14, %15, %cst_16 {dimension_numbers = #tpu.dot_dimension_numbers<[1], [0], [0], [1], [0, 0, 1, 1], [], []>} : vector<8x128xf32>, vector<128x8xf32>, vector<8x8xf32> -> vector<8x8xf32>
    %18 = vector.broadcast %16 : vector<1x8xf32> to vector<8x8xf32>
    %19 = arith.addf %17, %18 : vector<8x8xf32>
    %c0_17 = arith.constant 0 : index
    %c0_18 = arith.constant 0 : index
    %20 = vector.load %arg8[%c0_17, %c0_18] : memref<8x8xf32, #tpu.memory_space<vmem>>, vector<8x8xf32>
    tpu.vector_store %arg8[%c0_17, %c0_18], %19 {strides = array<i32>} : memref<8x8xf32, #tpu.memory_space<vmem>>, vector<8x8xf32>,
    return
  }
  func.func @transform_0(%arg0: i32) -> (i32, i32) {
    %c0_i32 = arith.constant 0 : i32
    %c0_i32_0 = arith.constant 0 : i32
    return %arg0, %c0_i32 : i32, i32
  }
  func.func @transform_1(%arg0: i32) -> (i32, i32) {
    %c0_i32 = arith.constant 0 : i32
    %c0_i32_0 = arith.constant 0 : i32
    %c0_i32_1 = arith.constant 0 : i32
    return %c0_i32, %c0_i32_0 : i32, i32
  }
  func.func @transform_2(%arg0: i32) -> (i32, i32) {
    %c0_i32 = arith.constant 0 : i32
    %c0_i32_0 = arith.constant 0 : i32
    %c0_i32_1 = arith.constant 0 : i32
    return %c0_i32, %c0_i32_0 : i32, i32
  }
  func.func @transform_3(%arg0: i32) -> (i32, i32) {
    %c0_i32 = arith.constant 0 : i32
    %c0_i32_0 = arith.constant 0 : i32
    %c0_i32_1 = arith.constant 0 : i32
    return %c0_i32, %c0_i32_0 : i32, i32
  }
  func.func @transform_4(%arg0: i32) -> (i32, i32) {
    %c0_i32 = arith.constant 0 : i32
    %c0_i32_0 = arith.constant 0 : i32
    %c0_i32_1 = arith.constant 0 : i32
    return %c0_i32, %c0_i32_0 : i32, i32
  }
  func.func @transform_5(%arg0: i32) -> (i32, i32) {
    %c0_i32 = arith.constant 0 : i32
    %c0_i32_0 = arith.constant 0 : i32
    %c0_i32_1 = arith.constant 0 : i32
    return %c0_i32, %c0_i32_0 : i32, i32
  }
  func.func @transform_6(%arg0: i32) -> (i32, i32) {
    %c0_i32 = arith.constant 0 : i32
    %c0_i32_0 = arith.constant 0 : i32
    %c0_i32_1 = arith.constant 0 : i32
    return %c0_i32, %c0_i32_0 : i32, i32
  }
  func.func @transform_7(%arg0: i32) -> (i32, i32) {
    %c0_i32 = arith.constant 0 : i32
    %c0_i32_0 = arith.constant 0 : i32
    return %arg0, %c0_i32 : i32, i32
  }
}

module attributes {stable_mosaic.version = 11 : i64} {
  func.func @kernel(%arg0: i32, %arg1: memref<8x32xf32, #tpu.memory_space<vmem>>, %arg2: memref<32x128xf32, #tpu.memory_space<vmem>>, %arg3: memref<1x128xf32, #tpu.memory_space<vmem>>, %arg4: memref<128x128xf32, #tpu.memory_space<vmem>>, %arg5: memref<1x128xf32, #tpu.memory_space<vmem>>, %arg6: memref<128x8xf32, #tpu.memory_space<vmem>>, %arg7: memref<1x8xf32, #tpu.memory_space<vmem>>, %arg8: memref<8x8xf32, #tpu.memory_space<vmem>>) attributes {dimension_semantics = [#tpu.dimension_semantics<parallel>], iteration_bounds = array<i64: 1>, scalar_prefetch = 0 : i64, scratch_operands = 0 : i64, tpu.core_type = #tpu.core_type<tc>, window_params = [{transform_indices = @transform_0, window_bounds = array<i64: 8, 32>}, {pipeline_mode = #tpu.pipeline_mode<synchronous>, transform_indices = @transform_1, window_bounds = array<i64: 32, 128>}, {pipeline_mode = #tpu.pipeline_mode<synchronous>, transform_indices = @transform_2, window_bounds = array<i64: 1, 128>}, {pipeline_mode = #tpu.pipeline_mode<synchronous>, transform_indices = @transform_3, window_bounds = array<i64: 128, 128>}, {pipeline_mode = #tpu.pipeline_mode<synchronous>, transform_indices = @transform_4, window_bounds = array<i64: 1, 128>}, {pipeline_mode = #tpu.pipeline_mode<synchronous>, transform_indices = @transform_5, window_bounds = array<i64: 128, 8>}, {pipeline_mode = #tpu.pipeline_mode<synchronous>, transform_indices = @transform_6, window_bounds = array<i64: 1, 8>}, {transform_indices = @transform_7, window_bounds = array<i64: 8, 8>}]} {
    %c0 = arith.constant 0 : index
    %c0_0 = arith.constant 0 : index
    %0 = vector.load %arg1[%c0, %c0_0] : memref<8x32xf32, #tpu.memory_space<vmem>>, vector<8x32xf32>
    %c0_1 = arith.constant 0 : index
    %c0_2 = arith.constant 0 : index
    %1 = vector.load %arg2[%c0_1, %c0_2] : memref<32x128xf32, #tpu.memory_space<vmem>>, vector<32x128xf32>
    %c0_3 = arith.constant 0 : index
    %c0_4 = arith.constant 0 : index
    %2 = vector.load %arg3[%c0_3, %c0_4] : memref<1x128xf32, #tpu.memory_space<vmem>>, vector<1x128xf32>
    %cst = arith.constant dense<0.000000e+00> : vector<8x128xf32>
    %3 = tpu.matmul %0, %1, %cst {dimension_numbers = #tpu.dot_dimension_numbers<[1], [0], [0], [1], [0, 0, 1, 1], [], []>} : vector<8x32xf32>, vector<32x128xf32>, vector<8x128xf32> -> vector<8x128xf32>
    %4 = vector.broadcast %2 : vector<1x128xf32> to vector<8x128xf32>
    %5 = arith.addf %3, %4 : vector<8x128xf32>
    %cst_5 = arith.constant 0.000000e+00 : f32
    %6 = vector.broadcast %cst_5 : f32 to vector<8x128xf32>
    %7 = arith.maximumf %5, %6 : vector<8x128xf32>
    %c0_6 = arith.constant 0 : index
    %c0_7 = arith.constant 0 : index
    %8 = vector.load %arg4[%c0_6, %c0_7] : memref<128x128xf32, #tpu.memory_space<vmem>>, vector<128x128xf32>
    %c0_8 = arith.constant 0 : index
    %c0_9 = arith.constant 0 : index
    %9 = vector.load %arg5[%c0_8, %c0_9] : memref<1x128xf32, #tpu.memory_space<vmem>>, vector<1x128xf32>
    %cst_10 = arith.constant dense<0.000000e+00> : vector<8x128xf32>
    %10 = tpu.matmul %7, %8, %cst_10 {dimension_numbers = #tpu.dot_dimension_numbers<[1], [0], [0], [1], [0, 0, 1, 1], [], []>} : vector<8x128xf32>, vector<128x128xf32>, vector<8x128xf32> -> vector<8x128xf32>
    %11 = vector.broadcast %9 : vector<1x128xf32> to vector<8x128xf32>
    %12 = arith.addf %10, %11 : vector<8x128xf32>
    %cst_11 = arith.constant 0.000000e+00 : f32
    %13 = vector.broadcast %cst_11 : f32 to vector<8x128xf32>
    %14 = arith.maximumf %12, %13 : vector<8x128xf32>
    %c0_12 = arith.constant 0 : index
    %c0_13 = arith.constant 0 : index
    %15 = vector.load %arg6[%c0_12, %c0_13] : memref<128x8xf32, #tpu.memory_space<vmem>>, vector<128x8xf32>
    %c0_14 = arith.constant 0 : index
    %c0_15 = arith.constant 0 : index
    %16 = vector.load %arg7[%c0_14, %c0_15] : memref<1x8xf32, #tpu.memory_space<vmem>>, vector<1x8xf32>
    %cst_16 = arith.constant dense<0.000000e+00> : vector<8x8xf32>
    %17 = tpu.matmul %14, %15, %cst_16 {dimension_numbers = #tpu.dot_dimension_numbers<[1], [0], [0], [1], [0, 0, 1, 1], [], []>} : vector<8x128xf32>, vector<128x8xf32>, vector<8x8xf32> -> vector<8x8xf32>
    %18 = vector.broadcast %16 : vector<1x8xf32> to vector<8x8xf32>
    %19 = arith.addf %17, %18 : vector<8x8xf32>
    %c0_17 = arith.constant 0 : index
    %c0_18 = arith.constant 0 : index
    %20 = vector.load %arg8[%c0_17, %c0_18] : memref<8x8xf32, #tpu.memory_space<vmem>>, vector<8x8xf32>
    tpu.vector_store %arg8[%c0_17, %c0_18], %19 {strides = array<i32>} : memref<8x8xf32, #tpu.memory_space<vmem>>, vector<8x8xf32>,
    return
  }
  func.func @transform_0(%arg0: i32) -> (i32, i32) {
    %c0_i32 = arith.constant 0 : i32
    %c0_i32_0 = arith.constant 0 : i32
    return %arg0, %c0_i32 : i32, i32
  }
  func.func @transform_1(%arg0: i32) -> (i32, i32) {
    %c0_i32 = arith.constant 0 : i32
    %c0_i32_0 = arith.constant 0 : i32
    %c0_i32_1 = arith.constant 0 : i32
    return %c0_i32, %c0_i32_0 : i32, i32
  }
  func.func @transform_2(%arg0: i32) -> (i32, i32) {
    %c0_i32 = arith.constant 0 : i32
    %c0_i32_0 = arith.constant 0 : i32
    %c0_i32_1 = arith.constant 0 : i32
    return %c0_i32, %c0_i32_0 : i32, i32
  }
  func.func @transform_3(%arg0: i32) -> (i32, i32) {
    %c0_i32 = arith.constant 0 : i32
    %c0_i32_0 = arith.constant 0 : i32
    %c0_i32_1 = arith.constant 0 : i32
    return %c0_i32, %c0_i32_0 : i32, i32
  }
  func.func @transform_4(%arg0: i32) -> (i32, i32) {
    %c0_i32 = arith.constant 0 : i32
    %c0_i32_0 = arith.constant 0 : i32
    %c0_i32_1 = arith.constant 0 : i32
    return %c0_i32, %c0_i32_0 : i32, i32
  }
  func.func @transform_5(%arg0: i32) -> (i32, i32) {
    %c0_i32 = arith.constant 0 : i32
    %c0_i32_0 = arith.constant 0 : i32
    %c0_i32_1 = arith.constant 0 : i32
    return %c0_i32, %c0_i32_0 : i32, i32
  }
  func.func @transform_6(%arg0: i32) -> (i32, i32) {
    %c0_i32 = arith.constant 0 : i32
    %c0_i32_0 = arith.constant 0 : i32
    %c0_i32_1 = arith.constant 0 : i32
    return %c0_i32, %c0_i32_0 : i32, i32
  }
  func.func @transform_7(%arg0: i32) -> (i32, i32) {
    %c0_i32 = arith.constant 0 : i32
    %c0_i32_0 = arith.constant 0 : i32
    return %arg0, %c0_i32 : i32, i32
  }
}

</mosaic_0001>

<llo_original>
// kernel: tpu_custom_call.1
$region0: #{tpu_custom_call.1}
  #allocation0 [shape = 'u32[]', space=smem, size = 0x4, offset = 0x4, fixed_abs, tag = 'smem constant byte address 0x4 - core index']
  #allocation1 [shape = 'u32[144,128]{1,0:T(1,128)}', space=vmem, size = 0x12000, scoped, tag = 'internal scratch']
  %s0 = inlined_call_operand.vmem [shape: f32[8,32], index: 0, kind: input, shape index: {}]
  %s1 = inlined_call_operand.hbm [shape: f32[32,128], index: 1, kind: input, shape index: {}]
  %s2 = inlined_call_operand.vmem [shape: f32[1,128], index: 2, kind: input, shape index: {}]
  %s3 = inlined_call_operand.vmem [shape: f32[128,128], index: 3, kind: input, shape index: {}]
  %s4 = inlined_call_operand.hbm [shape: f32[1,128], index: 4, kind: input, shape index: {}]
  %s5 = inlined_call_operand.vmem [shape: f32[128,8], index: 5, kind: input, shape index: {}]
  %s6 = inlined_call_operand.vmem [shape: f32[1,8], index: 6, kind: input, shape index: {}]
  %s7 = inlined_call_operand.hbm [shape: f32[8,8], index: 7, kind: output, shape index: {}]
  %s8 = sld [smem:[#allocation0]]
  $region46: #{tpu_custom_call.1} parent=0
    _
  %s10 = ssub.s32 1, %s8
  %s11 = scalar_select 0, %s10, %s8
  $region1: #{tpu_custom_call.1} parent=0
    #allocation2 [shape = 'u8[16384]{0}', space=vmem, size = 0x4000, scoped, tag = 'input window, operand 1, single buffered']
    #allocation3 [shape = 's32[1]{0}', space=sflag, size = 0x4, scoped, tag = 'scoped memory for tpu_custom_call.1']
    #allocation4 [shape = 's32[1]{0}', space=sflag, size = 0x4, scoped, tag = 'scoped memory for tpu_custom_call.1']
    #allocation5 [shape = 'u8[512]{0}', space=vmem, size = 0x400, scoped, tag = 'input window, operand 4, single buffered']
    #allocation6 [shape = 's32[1]{0}', space=sflag, size = 0x4, scoped, tag = 'scoped memory for tpu_custom_call.1']
    #allocation7 [shape = 'u8[4096]{0}', space=vmem, size = 0x1000, scoped, tag = 'output window, operand 0, single buffered']
    %12 = vsyncpa [#allocation3], 0
    %13 = vsyncpa [#allocation6], 0
    %14 = vsyncpa [#allocation4], 0
    // Predicated region
    $region2: #{tpu_custom_call.1} parent=1 // pred_check
      _
    $region3: #{tpu_custom_call.1} parent=1 // pred_check_branch
      %16 = sbr.rel (0) target = $region5
    $region4: #{tpu_custom_call.1} parent=1 // pred_region
      _
    $region5: #{tpu_custom_call.1} parent=1 // pred_fallthru
      _
    // Predicated region
    $region6: #{tpu_custom_call.1} parent=1 // pred_check
      _
    $region7: #{tpu_custom_call.1} parent=1 // pred_check_branch
      %18 = sbr.rel (0) target = $region9
    $region8: #{tpu_custom_call.1} parent=1 // pred_region
      %s20 = ssub.s32 512, 512
      %21 = vsyncadd [#allocation3], %s20
      %s22 = sshll.u32 [#allocation2], 4
      %s23 = int_to_ptr.vmem [resolvable:$true] %s22
      %28 = dma.hbm_to_vmem [thread:$0]  %s1, 512, %s23, [#allocation3], 128, 128, 8
    $region9: #{tpu_custom_call.1} parent=1 // pred_fallthru
      _
    // Predicated region
    $region10: #{tpu_custom_call.1} parent=1 // pred_check
      _
    $region11: #{tpu_custom_call.1} parent=1 // pred_check_branch
      %30 = sbr.rel (0) target = $region13
    $region12: #{tpu_custom_call.1} parent=1 // pred_region
      _
    $region13: #{tpu_custom_call.1} parent=1 // pred_fallthru
      _
    // Predicated region
    $region14: #{tpu_custom_call.1} parent=1 // pred_check
      _
    $region15: #{tpu_custom_call.1} parent=1 // pred_check_branch
      %32 = sbr.rel (0) target = $region17
    $region16: #{tpu_custom_call.1} parent=1 // pred_region
      _
    $region17: #{tpu_custom_call.1} parent=1 // pred_fallthru
      _
    // Predicated region
    $region18: #{tpu_custom_call.1} parent=1 // pred_check
      _
    $region19: #{tpu_custom_call.1} parent=1 // pred_check_branch
      %34 = sbr.rel (0) target = $region21
    $region20: #{tpu_custom_call.1} parent=1 // pred_region
      %s36 = ssub.s32 16, 16
      %37 = vsyncadd [#allocation6], %s36
      %s39 = sshll.u32 [#allocation5], 4
      %s40 = int_to_ptr.vmem [resolvable:$true] %s39
      %42 = dma.hbm_to_vmem [thread:$0]  %s4, 16, %s40, [#allocation6]
    $region21: #{tpu_custom_call.1} parent=1 // pred_fallthru
      _
    // Predicated region
    $region22: #{tpu_custom_call.1} parent=1 // pred_check
      _
    $region23: #{tpu_custom_call.1} parent=1 // pred_check_branch
      %44 = sbr.rel (0) target = $region25
    $region24: #{tpu_custom_call.1} parent=1 // pred_region
      _
    $region25: #{tpu_custom_call.1} parent=1 // pred_fallthru
      _
    // Predicated region
    $region26: #{tpu_custom_call.1} parent=1 // pred_check
      _
    $region27: #{tpu_custom_call.1} parent=1 // pred_check_branch
      %46 = sbr.rel (0) target = $region29
    $region28: #{tpu_custom_call.1} parent=1 // pred_region
      _
    $region29: #{tpu_custom_call.1} parent=1 // pred_fallthru
      _
    // Predicated region
    $region30: #{tpu_custom_call.1} parent=1 // pred_check
      _
    $region31: #{tpu_custom_call.1} parent=1 // pred_check_branch
      %48 = sbr.rel (0) target = $region33
    $region32: #{tpu_custom_call.1} parent=1 // pred_region
      %49 = dma.done [#allocation3], 512
    $region33: #{tpu_custom_call.1} parent=1 // pred_fallthru
      _
    // Predicated region
    $region34: #{tpu_custom_call.1} parent=1 // pred_check
      _
    $region35: #{tpu_custom_call.1} parent=1 // pred_check_branch
      %51 = sbr.rel (0) target = $region37
    $region36: #{tpu_custom_call.1} parent=1 // pred_region
      %52 = dma.done [#allocation6], 16
    $region37: #{tpu_custom_call.1} parent=1 // pred_fallthru
      _
    %v53 = vld [vmem:[%s0] sm:$0xff]
    %v54 = vld [vmem:[#allocation2] sm:$0xff]
    %v55 = vld [vmem:[#allocation2 + $0x8] sm:$0xff]
    %v56 = vld [vmem:[#allocation2 + $0x10] sm:$0xff]
    %v57 = vld [vmem:[#allocation2 + $0x18] sm:$0xff]
    %v58 = vld [vmem:[%s2] sm:$0x1]
    %v60 = vlaneseq
    %v61 = vshrl.u32 %v60, 7
    %v62 = vsub.s32 0, %v61
    %v63 = vrot.slane %v58, %v62
    %vm65 = vcmask 261120
    %v67 = vsel %vm65, %v53, 0
    %69 = vmatprep.subr.mxu0 0.0
    %70 = vmatpush1.msra.mxu0 0.0
    %71 = vmatprep.subr.mxu0 0.0
    %72 = vmatpush1.msra.mxu0 0.0
    %73 = vmatprep.subr.mxu0 0.0
    %74 = vmatpush1.msra.mxu0 0.0
    %75 = vmatprep.subr.mxu0 0.0
    %76 = vmatpush1.msra.mxu0 0.0
    %77 = vmatprep.subr.mxu0 0.0
    %78 = vmatpush1.msra.mxu0 0.0
    %79 = vmatprep.subr.mxu0 0.0
    %80 = vmatpush1.msra.mxu0 0.0
    %81 = vmatprep.subr.mxu0 0.0
    %82 = vmatpush1.msra.mxu0 0.0
    %83 = vmatprep.subr.mxu0 0.0
    %84 = vmatpush1.msra.mxu0 0.0
    %85 = vmatprep.subr.mxu0 0.0
    %86 = vmatpush1.msra.mxu0 0.0
    %87 = vmatprep.subr.mxu0 0.0
    %88 = vmatpush1.msra.mxu0 0.0
    %89 = vmatprep.subr.mxu0 0.0
    %90 = vmatpush1.msra.mxu0 0.0
    %91 = vmatprep.subr.mxu0 0.0
    %92 = vmatpush1.msra.mxu0 0.0
    %93 = vmatprep.subr.mxu0 0.0
    %94 = vmatpush1.msra.mxu0 %v57
    %95 = vmatprep.subr.mxu0 0.0
    %96 = vmatpush1.msra.mxu0 %v56
    %97 = vmatprep.subr.mxu0 0.0
    %98 = vmatpush1.msra.mxu0 %v55
    %99 = vmatprep.subr.mxu0 0.0
    %100 = vmatpush1.msra.mxu0 %v54
    %101 = vmatprep.subr.mxu0 0.0
    %102 = vmatpush2.msra.mxu0 0.0
    %103 = vmatprep.subr.mxu0 0.0
    %104 = vmatpush2.msra.mxu0 0.0
    %105 = vmatprep.subr.mxu0 0.0
    %106 = vmatpush2.msra.mxu0 0.0
    %107 = vmatprep.subr.mxu0 0.0
    %108 = vmatpush2.msra.mxu0 0.0
    %109 = vmatprep.subr.mxu0 0.0
    %110 = vmatpush2.msra.mxu0 0.0
    %111 = vmatprep.subr.mxu0 0.0
    %112 = vmatpush2.msra.mxu0 0.0
    %113 = vmatprep.subr.mxu0 0.0
    %114 = vmatpush2.msra.mxu0 0.0
    %115 = vmatprep.subr.mxu0 0.0
    %116 = vmatpush2.msra.mxu0 0.0
    %117 = vmatprep.subr.mxu0 0.0
    %118 = vmatpush2.msra.mxu0 0.0
    %119 = vmatprep.subr.mxu0 0.0
    %120 = vmatpush2.msra.mxu0 0.0
    %121 = vmatprep.subr.mxu0 0.0
    %122 = vmatpush2.msra.mxu0 0.0
    %123 = vmatprep.subr.mxu0 0.0
    %124 = vmatpush2.msra.mxu0 0.0
    %125 = vmatprep.subr.mxu0 0.0
    %126 = vmatpush2.msra.mxu0 0.0
    %127 = vmatprep.subr.mxu0 0.0
    %128 = vmatpush2.msra.mxu0 0.0
    %129 = vmatprep.subr.mxu0 0.0
    %130 = vmatpush2.msra.mxu0 0.0
    %131 = vmatprep.subr.mxu0 0.0
    %132 = vmatpush2.msra.mxu0 0.0
    %133 = vmatprep.mubr.f32.mxu0 0.0
    %134 = vmatmul.mubr.f32.gmra.mxu0 %v67
    %v135 = vpop.f32.mrf.mxu0
    %v136 = vadd.f32 %v63, %v135
    %v137 = vpop.f32.mrf.mxu0
    %138 = vdwg.mxu0
    %v139 = vmax.f32 %v136, 0.0
    %v140 = vld [vmem:[%s3] sm:$0xff]
    %v141 = vld [vmem:[%s3 + $0x8] sm:$0xff]
    %v142 = vld [vmem:[%s3 + $0x10] sm:$0xff]
    %v143 = vld [vmem:[%s3 + $0x18] sm:$0xff]
    %v144 = vld [vmem:[%s3 + $0x20] sm:$0xff]
    %v145 = vld [vmem:[%s3 + $0x28] sm:$0xff]
    %v146 = vld [vmem:[%s3 + $0x30] sm:$0xff]
    %v147 = vld [vmem:[%s3 + $0x38] sm:$0xff]
    %v148 = vld [vmem:[%s3 + $0x40] sm:$0xff]
    %v149 = vld [vmem:[%s3 + $0x48] sm:$0xff]
    %v150 = vld [vmem:[%s3 + $0x50] sm:$0xff]
    %v151 = vld [vmem:[%s3 + $0x58] sm:$0xff]
    %v152 = vld [vmem:[%s3 + $0x60] sm:$0xff]
    %v153 = vld [vmem:[%s3 + $0x68] sm:$0xff]
    %v154 = vld [vmem:[%s3 + $0x70] sm:$0xff]
    %v155 = vld [vmem:[%s3 + $0x78] sm:$0xff]
    %v156 = vld [vmem:[#allocation5] sm:$0x1]
    %v158 = vlaneseq
    %v159 = vshrl.u32 %v158, 7
    %v160 = vsub.s32 0, %v159
    %v161 = vrot.slane %v156, %v160
    %163 = vmatprep.subr.mxu0 0.0
    %164 = vmatpush1.msra.mxu0 %v155
    %165 = vmatprep.subr.mxu0 0.0
    %166 = vmatpush1.msra.mxu0 %v154
    %167 = vmatprep.subr.mxu0 0.0
    %168 = vmatpush1.msra.mxu0 %v153
    %169 = vmatprep.subr.mxu0 0.0
    %170 = vmatpush1.msra.mxu0 %v152
    %171 = vmatprep.subr.mxu0 0.0
    %172 = vmatpush1.msra.mxu0 %v151
    %173 = vmatprep.subr.mxu0 0.0
    %174 = vmatpush1.msra.mxu0 %v150
    %175 = vmatprep.subr.mxu0 0.0
    %176 = vmatpush1.msra.mxu0 %v149
    %177 = vmatprep.subr.mxu0 0.0
    %178 = vmatpush1.msra.mxu0 %v148
    %179 = vmatprep.subr.mxu0 0.0
    %180 = vmatpush1.msra.mxu0 %v147
    %181 = vmatprep.subr.mxu0 0.0
    %182 = vmatpush1.msra.mxu0 %v146
    %183 = vmatprep.subr.mxu0 0.0
    %184 = vmatpush1.msra.mxu0 %v145
    %185 = vmatprep.subr.mxu0 0.0
    %186 = vmatpush1.msra.mxu0 %v144
    %187 = vmatprep.subr.mxu0 0.0
    %188 = vmatpush1.msra.mxu0 %v143
    %189 = vmatprep.subr.mxu0 0.0
    %190 = vmatpush1.msra.mxu0 %v142
    %191 = vmatprep.subr.mxu0 0.0
    %192 = vmatpush1.msra.mxu0 %v141
    %193 = vmatprep.subr.mxu0 0.0
    %194 = vmatpush1.msra.mxu0 %v140
    %195 = vmatprep.subr.mxu0 0.0
    %196 = vmatpush2.msra.mxu0 0.0
    %197 = vmatprep.subr.mxu0 0.0
    %198 = vmatpush2.msra.mxu0 0.0
    %199 = vmatprep.subr.mxu0 0.0
    %200 = vmatpush2.msra.mxu0 0.0
    %201 = vmatprep.subr.mxu0 0.0
    %202 = vmatpush2.msra.mxu0 0.0
    %203 = vmatprep.subr.mxu0 0.0
    %204 = vmatpush2.msra.mxu0 0.0
    %205 = vmatprep.subr.mxu0 0.0
    %206 = vmatpush2.msra.mxu0 0.0
    %207 = vmatprep.subr.mxu0 0.0
    %208 = vmatpush2.msra.mxu0 0.0
    %209 = vmatprep.subr.mxu0 0.0
    %210 = vmatpush2.msra.mxu0 0.0
    %211 = vmatprep.subr.mxu0 0.0
    %212 = vmatpush2.msra.mxu0 0.0
    %213 = vmatprep.subr.mxu0 0.0
    %214 = vmatpush2.msra.mxu0 0.0
    %215 = vmatprep.subr.mxu0 0.0
    %216 = vmatpush2.msra.mxu0 0.0
    %217 = vmatprep.subr.mxu0 0.0
    %218 = vmatpush2.msra.mxu0 0.0
    %219 = vmatprep.subr.mxu0 0.0
    %220 = vmatpush2.msra.mxu0 0.0
    %221 = vmatprep.subr.mxu0 0.0
    %222 = vmatpush2.msra.mxu0 0.0
    %223 = vmatprep.subr.mxu0 0.0
    %224 = vmatpush2.msra.mxu0 0.0
    %225 = vmatprep.subr.mxu0 0.0
    %226 = vmatpush2.msra.mxu0 0.0
    %227 = vmatprep.mubr.f32.mxu0 0.0
    %228 = vmatmul.mubr.f32.gmra.mxu0 %v139
    %v229 = vpop.f32.mrf.mxu0
    %v230 = vadd.f32 %v161, %v229
    %v231 = vpop.f32.mrf.mxu0
    %232 = vdwg.mxu0
    %v233 = vmax.f32 %v230, 0.0
    %v234 = vld [vmem:[%s5] sm:$0xff]
    %v235 = vld [vmem:[%s5 + $0x8] sm:$0xff]
    %v236 = vld [vmem:[%s5 + $0x10] sm:$0xff]
    %v237 = vld [vmem:[%s5 + $0x18] sm:$0xff]
    %v238 = vld [vmem:[%s5 + $0x20] sm:$0xff]
    %v239 = vld [vmem:[%s5 + $0x28] sm:$0xff]
    %v240 = vld [vmem:[%s5 + $0x30] sm:$0xff]
    %v241 = vld [vmem:[%s5 + $0x38] sm:$0xff]
    %v242 = vld [vmem:[%s5 + $0x40] sm:$0xff]
    %v243 = vld [vmem:[%s5 + $0x48] sm:$0xff]
    %v244 = vld [vmem:[%s5 + $0x50] sm:$0xff]
    %v245 = vld [vmem:[%s5 + $0x58] sm:$0xff]
    %v246 = vld [vmem:[%s5 + $0x60] sm:$0xff]
    %v247 = vld [vmem:[%s5 + $0x68] sm:$0xff]
    %v248 = vld [vmem:[%s5 + $0x70] sm:$0xff]
    %v249 = vld [vmem:[%s5 + $0x78] sm:$0xff]
    %v250 = vld [vmem:[%s6] sm:$0x1]
    %v252 = vlaneseq
    %v253 = vshrl.u32 %v252, 7
    %v254 = vsub.s32 0, %v253
    %v255 = vrot.slane %v250, %v254
    %257 = vmatprep.subr.mxu0 0.0
    %258 = vmatpush1.msra.mxu0 %v249
    %259 = vmatprep.subr.mxu0 0.0
    %260 = vmatpush1.msra.mxu0 %v248
    %261 = vmatprep.subr.mxu0 0.0
    %262 = vmatpush1.msra.mxu0 %v247
    %263 = vmatprep.subr.mxu0 0.0
    %264 = vmatpush1.msra.mxu0 %v246
    %265 = vmatprep.subr.mxu0 0.0
    %266 = vmatpush1.msra.mxu0 %v245
    %267 = vmatprep.subr.mxu0 0.0
    %268 = vmatpush1.msra.mxu0 %v244
    %269 = vmatprep.subr.mxu0 0.0
    %270 = vmatpush1.msra.mxu0 %v243
    %271 = vmatprep.subr.mxu0 0.0
    %272 = vmatpush1.msra.mxu0 %v242
    %273 = vmatprep.subr.mxu0 0.0
    %274 = vmatpush1.msra.mxu0 %v241
    %275 = vmatprep.subr.mxu0 0.0
    %276 = vmatpush1.msra.mxu0 %v240
    %277 = vmatprep.subr.mxu0 0.0
    %278 = vmatpush1.msra.mxu0 %v239
    %279 = vmatprep.subr.mxu0 0.0
    %280 = vmatpush1.msra.mxu0 %v238
    %281 = vmatprep.subr.mxu0 0.0
    %282 = vmatpush1.msra.mxu0 %v237
    %283 = vmatprep.subr.mxu0 0.0
    %284 = vmatpush1.msra.mxu0 %v236
    %285 = vmatprep.subr.mxu0 0.0
    %286 = vmatpush1.msra.mxu0 %v235
    %287 = vmatprep.subr.mxu0 0.0
    %288 = vmatpush1.msra.mxu0 %v234
    %289 = vmatprep.subr.mxu0 0.0
    %290 = vmatpush2.msra.mxu0 0.0
    %291 = vmatprep.subr.mxu0 0.0
    %292 = vmatpush2.msra.mxu0 0.0
    %293 = vmatprep.subr.mxu0 0.0
    %294 = vmatpush2.msra.mxu0 0.0
    %295 = vmatprep.subr.mxu0 0.0
    %296 = vmatpush2.msra.mxu0 0.0
    %297 = vmatprep.subr.mxu0 0.0
    %298 = vmatpush2.msra.mxu0 0.0
    %299 = vmatprep.subr.mxu0 0.0
    %300 = vmatpush2.msra.mxu0 0.0
    %301 = vmatprep.subr.mxu0 0.0
    %302 = vmatpush2.msra.mxu0 0.0
    %303 = vmatprep.subr.mxu0 0.0
    %304 = vmatpush2.msra.mxu0 0.0
    %305 = vmatprep.subr.mxu0 0.0
    %306 = vmatpush2.msra.mxu0 0.0
    %307 = vmatprep.subr.mxu0 0.0
    %308 = vmatpush2.msra.mxu0 0.0
    %309 = vmatprep.subr.mxu0 0.0
    %310 = vmatpush2.msra.mxu0 0.0
    %311 = vmatprep.subr.mxu0 0.0
    %312 = vmatpush2.msra.mxu0 0.0
    %313 = vmatprep.subr.mxu0 0.0
    %314 = vmatpush2.msra.mxu0 0.0
    %315 = vmatprep.subr.mxu0 0.0
    %316 = vmatpush2.msra.mxu0 0.0
    %317 = vmatprep.subr.mxu0 0.0
    %318 = vmatpush2.msra.mxu0 0.0
    %319 = vmatprep.subr.mxu0 0.0
    %320 = vmatpush2.msra.mxu0 0.0
    %321 = vmatprep.mubr.f32.mxu0 0.0
    %322 = vmatmul.mubr.f32.gmra.mxu0 %v233
    %v323 = vpop.f32.mrf.mxu0
    %v324 = vadd.f32 %v255, %v323
    %v325 = vpop.f32.mrf.mxu0
    %326 = vdwg.mxu0
    %vm327 = vcmask 64512
    %328 = vst.msk [vmem:[#allocation7] sm:$0xff] %vm327, %v324
    // Predicated region
    $region38: #{tpu_custom_call.1} parent=1 // pred_check
      _
    $region39: #{tpu_custom_call.1} parent=1 // pred_check_branch
      %330 = sbr.rel (0) target = $region41
    $region40: #{tpu_custom_call.1} parent=1 // pred_region
      %s332 = ssub.s32 128, 128
      %333 = vsyncadd [#allocation4], %s332
      %s335 = sshll.u32 [#allocation7], 4
      %s336 = int_to_ptr.vmem [resolvable:$true] %s335
      %338 = dma.vmem_to_hbm [thread:$0]  %s336, 128, %s7, [#allocation4]
    $region41: #{tpu_custom_call.1} parent=1 // pred_fallthru
      _
    // Predicated region
    $region42: #{tpu_custom_call.1} parent=1 // pred_check
      _
    $region43: #{tpu_custom_call.1} parent=1 // pred_check_branch
      %340 = sbr.rel (0) target = $region45
    $region44: #{tpu_custom_call.1} parent=1 // pred_region
      %341 = dma.done [#allocation4], 128
    $region45: #{tpu_custom_call.1} parent=1 // pred_fallthru
      _
    %342 = vsyncpa [#allocation3], 1
    %343 = vsyncpa [#allocation6], 1
    %344 = vsyncpa [#allocation4], 1

// kernel: tpu_custom_call.1
$region0: #{tpu_custom_call.1}
  #allocation0 [shape = 'u32[]', space=smem, size = 0x4, offset = 0x4, fixed_abs, tag = 'smem constant byte address 0x4 - core index']
  #allocation1 [shape = 'u32[144,128]{1,0:T(1,128)}', space=vmem, size = 0x12000, scoped, tag = 'internal scratch']
  %s0 = inlined_call_operand.vmem [shape: f32[8,32], index: 0, kind: input, shape index: {}]
  %s1 = inlined_call_operand.hbm [shape: f32[32,128], index: 1, kind: input, shape index: {}]
  %s2 = inlined_call_operand.vmem [shape: f32[1,128], index: 2, kind: input, shape index: {}]
  %s3 = inlined_call_operand.vmem [shape: f32[128,128], index: 3, kind: input, shape index: {}]
  %s4 = inlined_call_operand.hbm [shape: f32[1,128], index: 4, kind: input, shape index: {}]
  %s5 = inlined_call_operand.vmem [shape: f32[128,8], index: 5, kind: input, shape index: {}]
  %s6 = inlined_call_operand.vmem [shape: f32[1,8], index: 6, kind: input, shape index: {}]
  %s7 = inlined_call_operand.hbm [shape: f32[8,8], index: 7, kind: output, shape index: {}]
  %s8 = sld [smem:[#allocation0]]
  $region46: #{tpu_custom_call.1} parent=0
    _
  %s10 = ssub.s32 1, %s8
  %s11 = scalar_select 0, %s10, %s8
  $region1: #{tpu_custom_call.1} parent=0
    #allocation2 [shape = 'u8[16384]{0}', space=vmem, size = 0x4000, scoped, tag = 'input window, operand 1, single buffered']
    #allocation3 [shape = 's32[1]{0}', space=sflag, size = 0x4, scoped, tag = 'scoped memory for tpu_custom_call.1']
    #allocation4 [shape = 's32[1]{0}', space=sflag, size = 0x4, scoped, tag = 'scoped memory for tpu_custom_call.1']
    #allocation5 [shape = 'u8[512]{0}', space=vmem, size = 0x400, scoped, tag = 'input window, operand 4, single buffered']
    #allocation6 [shape = 's32[1]{0}', space=sflag, size = 0x4, scoped, tag = 'scoped memory for tpu_custom_call.1']
    #allocation7 [shape = 'u8[4096]{0}', space=vmem, size = 0x1000, scoped, tag = 'output window, operand 0, single buffered']
    %12 = vsyncpa [#allocation3], 0
    %13 = vsyncpa [#allocation6], 0
    %14 = vsyncpa [#allocation4], 0
    // Predicated region
    $region2: #{tpu_custom_call.1} parent=1 // pred_check
      _
    $region3: #{tpu_custom_call.1} parent=1 // pred_check_branch
      %16 = sbr.rel (0) target = $region5
    $region4: #{tpu_custom_call.1} parent=1 // pred_region
      _
    $region5: #{tpu_custom_call.1} parent=1 // pred_fallthru
      _
    // Predicated region
    $region6: #{tpu_custom_call.1} parent=1 // pred_check
      _
    $region7: #{tpu_custom_call.1} parent=1 // pred_check_branch
      %18 = sbr.rel (0) target = $region9
    $region8: #{tpu_custom_call.1} parent=1 // pred_region
      %s20 = ssub.s32 512, 512
      %21 = vsyncadd [#allocation3], %s20
      %s22 = sshll.u32 [#allocation2], 4
      %s23 = int_to_ptr.vmem [resolvable:$true] %s22
      %28 = dma.hbm_to_vmem [thread:$0]  %s1, 512, %s23, [#allocation3], 128, 128, 8
    $region9: #{tpu_custom_call.1} parent=1 // pred_fallthru
      _
    // Predicated region
    $region10: #{tpu_custom_call.1} parent=1 // pred_check
      _
    $region11: #{tpu_custom_call.1} parent=1 // pred_check_branch
      %30 = sbr.rel (0) target = $region13
    $region12: #{tpu_custom_call.1} parent=1 // pred_region
      _
    $region13: #{tpu_custom_call.1} parent=1 // pred_fallthru
      _
    // Predicated region
    $region14: #{tpu_custom_call.1} parent=1 // pred_check
      _
    $region15: #{tpu_custom_call.1} parent=1 // pred_check_branch
      %32 = sbr.rel (0) target = $region17
    $region16: #{tpu_custom_call.1} parent=1 // pred_region
      _
    $region17: #{tpu_custom_call.1} parent=1 // pred_fallthru
      _
    // Predicated region
    $region18: #{tpu_custom_call.1} parent=1 // pred_check
      _
    $region19: #{tpu_custom_call.1} parent=1 // pred_check_branch
      %34 = sbr.rel (0) target = $region21
    $region20: #{tpu_custom_call.1} parent=1 // pred_region
      %s36 = ssub.s32 16, 16
      %37 = vsyncadd [#allocation6], %s36
      %s39 = sshll.u32 [#allocation5], 4
      %s40 = int_to_ptr.vmem [resolvable:$true] %s39
      %42 = dma.hbm_to_vmem [thread:$0]  %s4, 16, %s40, [#allocation6]
    $region21: #{tpu_custom_call.1} parent=1 // pred_fallthru
      _
    // Predicated region
    $region22: #{tpu_custom_call.1} parent=1 // pred_check
      _
    $region23: #{tpu_custom_call.1} parent=1 // pred_check_branch
      %44 = sbr.rel (0) target = $region25
    $region24: #{tpu_custom_call.1} parent=1 // pred_region
      _
    $region25: #{tpu_custom_call.1} parent=1 // pred_fallthru
      _
    // Predicated region
    $region26: #{tpu_custom_call.1} parent=1 // pred_check
      _
    $region27: #{tpu_custom_call.1} parent=1 // pred_check_branch
      %46 = sbr.rel (0) target = $region29
    $region28: #{tpu_custom_call.1} parent=1 // pred_region
      _
    $region29: #{tpu_custom_call.1} parent=1 // pred_fallthru
      _
    // Predicated region
    $region30: #{tpu_custom_call.1} parent=1 // pred_check
      _
    $region31: #{tpu_custom_call.1} parent=1 // pred_check_branch
      %48 = sbr.rel (0) target = $region33
    $region32: #{tpu_custom_call.1} parent=1 // pred_region
      %49 = dma.done [#allocation3], 512
    $region33: #{tpu_custom_call.1} parent=1 // pred_fallthru
      _
    // Predicated region
    $region34: #{tpu_custom_call.1} parent=1 // pred_check
      _
    $region35: #{tpu_custom_call.1} parent=1 // pred_check_branch
      %51 = sbr.rel (0) target = $region37
    $region36: #{tpu_custom_call.1} parent=1 // pred_region
      %52 = dma.done [#allocation6], 16
    $region37: #{tpu_custom_call.1} parent=1 // pred_fallthru
      _
    %v53 = vld [vmem:[%s0] sm:$0xff]
    %v54 = vld [vmem:[#allocation2] sm:$0xff]
    %v55 = vld [vmem:[#allocation2 + $0x8] sm:$0xff]
    %v56 = vld [vmem:[#allocation2 + $0x10] sm:$0xff]
    %v57 = vld [vmem:[#allocation2 + $0x18] sm:$0xff]
    %v58 = vld [vmem:[%s2] sm:$0x1]
    %v60 = vlaneseq
    %v61 = vshrl.u32 %v60, 7
    %v62 = vsub.s32 0, %v61
    %v63 = vrot.slane %v58, %v62
    %vm65 = vcmask 261120
    %v67 = vsel %vm65, %v53, 0
    %69 = vmatprep.subr.mxu0 0.0
    %70 = vmatpush1.msra.mxu0 0.0
    %71 = vmatprep.subr.mxu0 0.0
    %72 = vmatpush1.msra.mxu0 0.0
    %73 = vmatprep.subr.mxu0 0.0
    %74 = vmatpush1.msra.mxu0 0.0
    %75 = vmatprep.subr.mxu0 0.0
    %76 = vmatpush1.msra.mxu0 0.0
    %77 = vmatprep.subr.mxu0 0.0
    %78 = vmatpush1.msra.mxu0 0.0
    %79 = vmatprep.subr.mxu0 0.0
    %80 = vmatpush1.msra.mxu0 0.0
    %81 = vmatprep.subr.mxu0 0.0
    %82 = vmatpush1.msra.mxu0 0.0
    %83 = vmatprep.subr.mxu0 0.0
    %84 = vmatpush1.msra.mxu0 0.0
    %85 = vmatprep.subr.mxu0 0.0
    %86 = vmatpush1.msra.mxu0 0.0
    %87 = vmatprep.subr.mxu0 0.0
    %88 = vmatpush1.msra.mxu0 0.0
    %89 = vmatprep.subr.mxu0 0.0
    %90 = vmatpush1.msra.mxu0 0.0
    %91 = vmatprep.subr.mxu0 0.0
    %92 = vmatpush1.msra.mxu0 0.0
    %93 = vmatprep.subr.mxu0 0.0
    %94 = vmatpush1.msra.mxu0 %v57
    %95 = vmatprep.subr.mxu0 0.0
    %96 = vmatpush1.msra.mxu0 %v56
    %97 = vmatprep.subr.mxu0 0.0
    %98 = vmatpush1.msra.mxu0 %v55
    %99 = vmatprep.subr.mxu0 0.0
    %100 = vmatpush1.msra.mxu0 %v54
    %101 = vmatprep.subr.mxu0 0.0
    %102 = vmatpush2.msra.mxu0 0.0
    %103 = vmatprep.subr.mxu0 0.0
    %104 = vmatpush2.msra.mxu0 0.0
    %105 = vmatprep.subr.mxu0 0.0
    %106 = vmatpush2.msra.mxu0 0.0
    %107 = vmatprep.subr.mxu0 0.0
    %108 = vmatpush2.msra.mxu0 0.0
    %109 = vmatprep.subr.mxu0 0.0
    %110 = vmatpush2.msra.mxu0 0.0
    %111 = vmatprep.subr.mxu0 0.0
    %112 = vmatpush2.msra.mxu0 0.0
    %113 = vmatprep.subr.mxu0 0.0
    %114 = vmatpush2.msra.mxu0 0.0
    %115 = vmatprep.subr.mxu0 0.0
    %116 = vmatpush2.msra.mxu0 0.0
    %117 = vmatprep.subr.mxu0 0.0
    %118 = vmatpush2.msra.mxu0 0.0
    %119 = vmatprep.subr.mxu0 0.0
    %120 = vmatpush2.msra.mxu0 0.0
    %121 = vmatprep.subr.mxu0 0.0
    %122 = vmatpush2.msra.mxu0 0.0
    %123 = vmatprep.subr.mxu0 0.0
    %124 = vmatpush2.msra.mxu0 0.0
    %125 = vmatprep.subr.mxu0 0.0
    %126 = vmatpush2.msra.mxu0 0.0
    %127 = vmatprep.subr.mxu0 0.0
    %128 = vmatpush2.msra.mxu0 0.0
    %129 = vmatprep.subr.mxu0 0.0
    %130 = vmatpush2.msra.mxu0 0.0
    %131 = vmatprep.subr.mxu0 0.0
    %132 = vmatpush2.msra.mxu0 0.0
    %133 = vmatprep.mubr.f32.mxu0 0.0
    %134 = vmatmul.mubr.f32.gmra.mxu0 %v67
    %v135 = vpop.f32.mrf.mxu0
    %v136 = vadd.f32 %v63, %v135
    %v137 = vpop.f32.mrf.mxu0
    %138 = vdwg.mxu0
    %v139 = vmax.f32 %v136, 0.0
    %v140 = vld [vmem:[%s3] sm:$0xff]
    %v141 = vld [vmem:[%s3 + $0x8] sm:$0xff]
    %v142 = vld [vmem:[%s3 + $0x10] sm:$0xff]
    %v143 = vld [vmem:[%s3 + $0x18] sm:$0xff]
    %v144 = vld [vmem:[%s3 + $0x20] sm:$0xff]
    %v145 = vld [vmem:[%s3 + $0x28] sm:$0xff]
    %v146 = vld [vmem:[%s3 + $0x30] sm:$0xff]
    %v147 = vld [vmem:[%s3 + $0x38] sm:$0xff]
    %v148 = vld [vmem:[%s3 + $0x40] sm:$0xff]
    %v149 = vld [vmem:[%s3 + $0x48] sm:$0xff]
    %v150 = vld [vmem:[%s3 + $0x50] sm:$0xff]
    %v151 = vld [vmem:[%s3 + $0x58] sm:$0xff]
    %v152 = vld [vmem:[%s3 + $0x60] sm:$0xff]
    %v153 = vld [vmem:[%s3 + $0x68] sm:$0xff]
    %v154 = vld [vmem:[%s3 + $0x70] sm:$0xff]
    %v155 = vld [vmem:[%s3 + $0x78] sm:$0xff]
    %v156 = vld [vmem:[#allocation5] sm:$0x1]
    %v158 = vlaneseq
    %v159 = vshrl.u32 %v158, 7
    %v160 = vsub.s32 0, %v159
    %v161 = vrot.slane %v156, %v160
    %163 = vmatprep.subr.mxu0 0.0
    %164 = vmatpush1.msra.mxu0 %v155
    %165 = vmatprep.subr.mxu0 0.0
    %166 = vmatpush1.msra.mxu0 %v154
    %167 = vmatprep.subr.mxu0 0.0
    %168 = vmatpush1.msra.mxu0 %v153
    %169 = vmatprep.subr.mxu0 0.0
    %170 = vmatpush1.msra.mxu0 %v152
    %171 = vmatprep.subr.mxu0 0.0
    %172 = vmatpush1.msra.mxu0 %v151
    %173 = vmatprep.subr.mxu0 0.0
    %174 = vmatpush1.msra.mxu0 %v150
    %175 = vmatprep.subr.mxu0 0.0
    %176 = vmatpush1.msra.mxu0 %v149
    %177 = vmatprep.subr.mxu0 0.0
    %178 = vmatpush1.msra.mxu0 %v148
    %179 = vmatprep.subr.mxu0 0.0
    %180 = vmatpush1.msra.mxu0 %v147
    %181 = vmatprep.subr.mxu0 0.0
    %182 = vmatpush1.msra.mxu0 %v146
    %183 = vmatprep.subr.mxu0 0.0
    %184 = vmatpush1.msra.mxu0 %v145
    %185 = vmatprep.subr.mxu0 0.0
    %186 = vmatpush1.msra.mxu0 %v144
    %187 = vmatprep.subr.mxu0 0.0
    %188 = vmatpush1.msra.mxu0 %v143
    %189 = vmatprep.subr.mxu0 0.0
    %190 = vmatpush1.msra.mxu0 %v142
    %191 = vmatprep.subr.mxu0 0.0
    %192 = vmatpush1.msra.mxu0 %v141
    %193 = vmatprep.subr.mxu0 0.0
    %194 = vmatpush1.msra.mxu0 %v140
    %195 = vmatprep.subr.mxu0 0.0
    %196 = vmatpush2.msra.mxu0 0.0
    %197 = vmatprep.subr.mxu0 0.0
    %198 = vmatpush2.msra.mxu0 0.0
    %199 = vmatprep.subr.mxu0 0.0
    %200 = vmatpush2.msra.mxu0 0.0
    %201 = vmatprep.subr.mxu0 0.0
    %202 = vmatpush2.msra.mxu0 0.0
    %203 = vmatprep.subr.mxu0 0.0
    %204 = vmatpush2.msra.mxu0 0.0
    %205 = vmatprep.subr.mxu0 0.0
    %206 = vmatpush2.msra.mxu0 0.0
    %207 = vmatprep.subr.mxu0 0.0
    %208 = vmatpush2.msra.mxu0 0.0
    %209 = vmatprep.subr.mxu0 0.0
    %210 = vmatpush2.msra.mxu0 0.0
    %211 = vmatprep.subr.mxu0 0.0
    %212 = vmatpush2.msra.mxu0 0.0
    %213 = vmatprep.subr.mxu0 0.0
    %214 = vmatpush2.msra.mxu0 0.0
    %215 = vmatprep.subr.mxu0 0.0
    %216 = vmatpush2.msra.mxu0 0.0
    %217 = vmatprep.subr.mxu0 0.0
    %218 = vmatpush2.msra.mxu0 0.0
    %219 = vmatprep.subr.mxu0 0.0
    %220 = vmatpush2.msra.mxu0 0.0
    %221 = vmatprep.subr.mxu0 0.0
    %222 = vmatpush2.msra.mxu0 0.0
    %223 = vmatprep.subr.mxu0 0.0
    %224 = vmatpush2.msra.mxu0 0.0
    %225 = vmatprep.subr.mxu0 0.0
    %226 = vmatpush2.msra.mxu0 0.0
    %227 = vmatprep.mubr.f32.mxu0 0.0
    %228 = vmatmul.mubr.f32.gmra.mxu0 %v139
    %v229 = vpop.f32.mrf.mxu0
    %v230 = vadd.f32 %v161, %v229
    %v231 = vpop.f32.mrf.mxu0
    %232 = vdwg.mxu0
    %v233 = vmax.f32 %v230, 0.0
    %v234 = vld [vmem:[%s5] sm:$0xff]
    %v235 = vld [vmem:[%s5 + $0x8] sm:$0xff]
    %v236 = vld [vmem:[%s5 + $0x10] sm:$0xff]
    %v237 = vld [vmem:[%s5 + $0x18] sm:$0xff]
    %v238 = vld [vmem:[%s5 + $0x20] sm:$0xff]
    %v239 = vld [vmem:[%s5 + $0x28] sm:$0xff]
    %v240 = vld [vmem:[%s5 + $0x30] sm:$0xff]
    %v241 = vld [vmem:[%s5 + $0x38] sm:$0xff]
    %v242 = vld [vmem:[%s5 + $0x40] sm:$0xff]
    %v243 = vld [vmem:[%s5 + $0x48] sm:$0xff]
    %v244 = vld [vmem:[%s5 + $0x50] sm:$0xff]
    %v245 = vld [vmem:[%s5 + $0x58] sm:$0xff]
    %v246 = vld [vmem:[%s5 + $0x60] sm:$0xff]
    %v247 = vld [vmem:[%s5 + $0x68] sm:$0xff]
    %v248 = vld [vmem:[%s5 + $0x70] sm:$0xff]
    %v249 = vld [vmem:[%s5 + $0x78] sm:$0xff]
    %v250 = vld [vmem:[%s6] sm:$0x1]
    %v252 = vlaneseq
    %v253 = vshrl.u32 %v252, 7
    %v254 = vsub.s32 0, %v253
    %v255 = vrot.slane %v250, %v254
    %257 = vmatprep.subr.mxu0 0.0
    %258 = vmatpush1.msra.mxu0 %v249
    %259 = vmatprep.subr.mxu0 0.0
    %260 = vmatpush1.msra.mxu0 %v248
    %261 = vmatprep.subr.mxu0 0.0
    %262 = vmatpush1.msra.mxu0 %v247
    %263 = vmatprep.subr.mxu0 0.0
    %264 = vmatpush1.msra.mxu0 %v246
    %265 = vmatprep.subr.mxu0 0.0
    %266 = vmatpush1.msra.mxu0 %v245
    %267 = vmatprep.subr.mxu0 0.0
    %268 = vmatpush1.msra.mxu0 %v244
    %269 = vmatprep.subr.mxu0 0.0
    %270 = vmatpush1.msra.mxu0 %v243
    %271 = vmatprep.subr.mxu0 0.0
    %272 = vmatpush1.msra.mxu0 %v242
    %273 = vmatprep.subr.mxu0 0.0
    %274 = vmatpush1.msra.mxu0 %v241
    %275 = vmatprep.subr.mxu0 0.0
    %276 = vmatpush1.msra.mxu0 %v240
    %277 = vmatprep.subr.mxu0 0.0
    %278 = vmatpush1.msra.mxu0 %v239
    %279 = vmatprep.subr.mxu0 0.0
    %280 = vmatpush1.msra.mxu0 %v238
    %281 = vmatprep.subr.mxu0 0.0
    %282 = vmatpush1.msra.mxu0 %v237
    %283 = vmatprep.subr.mxu0 0.0
    %284 = vmatpush1.msra.mxu0 %v236
    %285 = vmatprep.subr.mxu0 0.0
    %286 = vmatpush1.msra.mxu0 %v235
    %287 = vmatprep.subr.mxu0 0.0
    %288 = vmatpush1.msra.mxu0 %v234
    %289 = vmatprep.subr.mxu0 0.0
    %290 = vmatpush2.msra.mxu0 0.0
    %291 = vmatprep.subr.mxu0 0.0
    %292 = vmatpush2.msra.mxu0 0.0
    %293 = vmatprep.subr.mxu0 0.0
    %294 = vmatpush2.msra.mxu0 0.0
    %295 = vmatprep.subr.mxu0 0.0
    %296 = vmatpush2.msra.mxu0 0.0
    %297 = vmatprep.subr.mxu0 0.0
    %298 = vmatpush2.msra.mxu0 0.0
    %299 = vmatprep.subr.mxu0 0.0
    %300 = vmatpush2.msra.mxu0 0.0
    %301 = vmatprep.subr.mxu0 0.0
    %302 = vmatpush2.msra.mxu0 0.0
    %303 = vmatprep.subr.mxu0 0.0
    %304 = vmatpush2.msra.mxu0 0.0
    %305 = vmatprep.subr.mxu0 0.0
    %306 = vmatpush2.msra.mxu0 0.0
    %307 = vmatprep.subr.mxu0 0.0
    %308 = vmatpush2.msra.mxu0 0.0
    %309 = vmatprep.subr.mxu0 0.0
    %310 = vmatpush2.msra.mxu0 0.0
    %311 = vmatprep.subr.mxu0 0.0
    %312 = vmatpush2.msra.mxu0 0.0
    %313 = vmatprep.subr.mxu0 0.0
    %314 = vmatpush2.msra.mxu0 0.0
    %315 = vmatprep.subr.mxu0 0.0
    %316 = vmatpush2.msra.mxu0 0.0
    %317 = vmatprep.subr.mxu0 0.0
    %318 = vmatpush2.msra.mxu0 0.0
    %319 = vmatprep.subr.mxu0 0.0
    %320 = vmatpush2.msra.mxu0 0.0
    %321 = vmatprep.mubr.f32.mxu0 0.0
    %322 = vmatmul.mubr.f32.gmra.mxu0 %v233
    %v323 = vpop.f32.mrf.mxu0
    %v324 = vadd.f32 %v255, %v323
    %v325 = vpop.f32.mrf.mxu0
    %326 = vdwg.mxu0
    %vm327 = vcmask 64512
    %328 = vst.msk [vmem:[#allocation7] sm:$0xff] %vm327, %v324
    // Predicated region
    $region38: #{tpu_custom_call.1} parent=1 // pred_check
      _
    $region39: #{tpu_custom_call.1} parent=1 // pred_check_branch
      %330 = sbr.rel (0) target = $region41
    $region40: #{tpu_custom_call.1} parent=1 // pred_region
      %s332 = ssub.s32 128, 128
      %333 = vsyncadd [#allocation4], %s332
      %s335 = sshll.u32 [#allocation7], 4
      %s336 = int_to_ptr.vmem [resolvable:$true] %s335
      %338 = dma.vmem_to_hbm [thread:$0]  %s336, 128, %s7, [#allocation4]
    $region41: #{tpu_custom_call.1} parent=1 // pred_fallthru
      _
    // Predicated region
    $region42: #{tpu_custom_call.1} parent=1 // pred_check
      _
    $region43: #{tpu_custom_call.1} parent=1 // pred_check_branch
      %340 = sbr.rel (0) target = $region45
    $region44: #{tpu_custom_call.1} parent=1 // pred_region
      %341 = dma.done [#allocation4], 128
    $region45: #{tpu_custom_call.1} parent=1 // pred_fallthru
      _
    %342 = vsyncpa [#allocation3], 1
    %343 = vsyncpa [#allocation6], 1
    %344 = vsyncpa [#allocation4], 1

</llo_original>
